<compile_context>
chip_gen: v7x
topology: tpu7x:2x2x1
jax: 0.10.0
libtpu: 0.0.40
codegen_flags: <defaults>
</compile_context>

<pallas_src>
import functools

import jax
import jax.numpy as jnp
from jax import lax
from jax.experimental import pallas as pl
from jax.experimental.pallas import tpu as pltpu

BN_EPS = 1e-5
LANE = 128


# --------------------------------------------------------------------------
# Generation-aware VMEM budget.
# --------------------------------------------------------------------------
def _vmem_budget_bytes():
    """~3/4 of physical VMEM, capped at 96 MiB.
    v5e/v6e (128 MiB) -> 96 MiB, v7x (64 MiB) -> 48 MiB, unknown -> 48 MiB."""
    try:
        cap = int(pltpu.get_tpu_info().vmem_capacity_bytes)
    except Exception:
        cap = 64 * 1024 * 1024
    return int(min(cap * 3 // 4, 96 * 1024 * 1024))


VMEM_LIMIT = _vmem_budget_bytes()


def _round_up(v, m):
    return ((v + m - 1) // m) * m


def _pad_last(a, target):
    pad = target - a.shape[-1]
    if pad == 0:
        return a
    return jnp.pad(a, [(0, 0)] * (a.ndim - 1) + [(0, pad)])


# --------------------------------------------------------------------------
# Parameter preparation (lane-pad weights for the MXU, pack BN affine as [2,F]).
# --------------------------------------------------------------------------
def prepare_params(params, matmul_dtype=jnp.float32):
    """Linear biases are dropped: training-mode BN subtracts the batch mean
    immediately after each Linear, so they cancel exactly.
    matmul_dtype=jnp.bfloat16 gives 2x MXU throughput on v6e/v7x; BN math stays f32."""
    d_in, hidden = params["w1"].shape
    d_out = params["w2"].shape[1]
    hp = _round_up(hidden, LANE)
    dp = _round_up(d_out, LANE)

    w1p = _pad_last(params["w1"], hp).astype(matmul_dtype)                       # [d_in, hp]
    w2p = jnp.pad(params["w2"], ((0, hp - hidden), (0, dp - d_out))).astype(matmul_dtype)
    p1 = jnp.concatenate([_pad_last(params["g1"], hp),
                          _pad_last(params["be1"], hp)], axis=0).astype(jnp.float32)
    p2 = jnp.concatenate([_pad_last(params["g2"], dp),
                          _pad_last(params["be2"], dp)], axis=0).astype(jnp.float32)
    return {"w1": w1p, "p1": p1, "w2": w2p, "p2": p2,
            "d_in": d_in, "d_out": d_out, "hp": hp, "dp": dp}


# --------------------------------------------------------------------------
# Fused kernel: whole batch resident in VMEM (x and out touch HBM exactly once).
# --------------------------------------------------------------------------
def _fused_kernel(x_ref, w1_ref, p1_ref, w2_ref, p2_ref, o_ref, *, d_out):
    x = x_ref[...]
    h = jnp.dot(x.astype(w1_ref.dtype), w1_ref[...],
                preferred_element_type=jnp.float32)
    mean1 = jnp.mean(h, axis=0, keepdims=True)
    var1 = jnp.maximum(jnp.mean(h * h, axis=0, keepdims=True) - mean1 * mean1, 0.0)
    scale1 = p1_ref[0:1, :] * lax.rsqrt(var1 + BN_EPS)
    shift1 = p1_ref[1:2, :] - mean1 * scale1
    a = jnp.maximum(h * scale1 + shift1, 0.0)                   # BN1 + ReLU1

    y = jnp.dot(a.astype(w2_ref.dtype), w2_ref[...],
                preferred_element_type=jnp.float32)
    mean2 = jnp.mean(y, axis=0, keepdims=True)
    var2 = jnp.maximum(jnp.mean(y * y, axis=0, keepdims=True) - mean2 * mean2, 0.0)
    scale2 = p2_ref[0:1, :] * lax.rsqrt(var2 + BN_EPS)
    shift2 = p2_ref[1:2, :] - mean2 * scale2
    out = jnp.maximum(y * scale2 + shift2, 0.0)                 # BN2 + ReLU2
    o_ref[...] = out[:, :d_out].astype(o_ref.dtype)             # store unpadded


# --------------------------------------------------------------------------
# Streaming path: 3 fully-parallel passes over batch tiles, recompute from x.
# --------------------------------------------------------------------------
def _row_mask(tn, n_real):
    row = pl.program_id(0) * tn + lax.broadcasted_iota(jnp.int32, (tn, 1), 0)
    return row < n_real


def _bn1_stats_kernel(x_ref, w1_ref, s1_ref, *, tn, n_real):
    h = jnp.dot(x_ref[...].astype(w1_ref.dtype), w1_ref[...],
                preferred_element_type=jnp.float32)
    h = jnp.where(_row_mask(tn, n_real), h, 0.0)     # drop out-of-bounds rows
    s1_ref[...] = jnp.concatenate(
        [jnp.sum(h, axis=0, keepdims=True),
         jnp.sum(h * h, axis=0, keepdims=True)], axis=0)[None]


def _bn2_stats_kernel(x_ref, w1_ref, f1_ref, w2_ref, s2_ref, *, tn, n_real):
    h = jnp.dot(x_ref[...].astype(w1_ref.dtype), w1_ref[...],
                preferred_element_type=jnp.float32)
    a = jnp.maximum(h * f1_ref[0:1, :] + f1_ref[1:2, :], 0.0)   # folded BN1 + ReLU
    y = jnp.dot(a.astype(w2_ref.dtype), w2_ref[...],
                preferred_element_type=jnp.float32)
    y = jnp.where(_row_mask(tn, n_real), y, 0.0)
    s2_ref[...] = jnp.concatenate(
        [jnp.sum(y, axis=0, keepdims=True),
         jnp.sum(y * y, axis=0, keepdims=True)], axis=0)[None]


def _final_kernel(x_ref, w1_ref, f1_ref, w2_ref, f2_ref, o_ref, *, d_out):
    h = jnp.dot(x_ref[...].astype(w1_ref.dtype), w1_ref[...],
                preferred_element_type=jnp.float32)
    a = jnp.maximum(h * f1_ref[0:1, :] + f1_ref[1:2, :], 0.0)
    y = jnp.dot(a.astype(w2_ref.dtype), w2_ref[...],
                preferred_element_type=jnp.float32)
    out = jnp.maximum(y * f2_ref[0:1, :] + f2_ref[1:2, :], 0.0)
    o_ref[...] = out[:, :d_out].astype(o_ref.dtype)             # store unpadded


def _fold_bn(stats, p, inv_n):
    """stats=[sum; sumsq] (2,F), p=[gamma; beta] (2,F) -> [scale; shift] (2,F)."""
    mean = stats[0:1, :] * inv_n
    var = jnp.maximum(stats[1:2, :] * inv_n - mean * mean, 0.0)
    scale = p[0:1, :] * lax.rsqrt(var + BN_EPS)
    shift = p[1:2, :] - mean * scale
    return jnp.concatenate([scale, shift], axis=0)


def _streamed_x_spec(tn, d_in):
    """Triple-buffer the streamed x tiles when supported (compute per tile is tiny,
    so DMA latency is otherwise exposed); x tiles are narrow so the cost is small."""
    try:
        return pl.BlockSpec((tn, d_in), lambda i: (i, 0),
                            pipeline_mode=pl.Buffered(3))
    except Exception:
        return pl.BlockSpec((tn, d_in), lambda i: (i, 0))


def _auto_batch_tile(n, d_in, hp, dp):
    # Conservative per-row VMEM estimate for the widest pass (x triple-buffered
    # plus f32 h/a/y temporaries), leaving the resident weights out of the tile.
    per_row = 4 * (3 * d_in + 2 * hp + 2 * dp)
    resident = 4 * (d_in * hp + hp * dp + 4 * (hp + dp))
    avail = max(VMEM_LIMIT - resident, 1 << 20)
    t = max(128, min(2048, avail // per_row))
    return int(t - (t % 8))


def _fused_row_limit(d_in, hp, dp, d_out):
    # Whole-batch path: x + h + a + y (+ elementwise temps) resident in VMEM.
    per_row = 4 * (d_in + 3 * hp + 2 * dp + d_out)
    return max(256, (VMEM_LIMIT // 2) // per_row)


def _feature_extractor_fused(x, pp):
    n = x.shape[0]
    vmem = pl.BlockSpec(memory_space=pltpu.MemorySpace.VMEM)
    return pl.pallas_call(
        functools.partial(_fused_kernel, d_out=pp["d_out"]),
        out_shape=jax.ShapeDtypeStruct((n, pp["d_out"]), jnp.float32),
        in_specs=[vmem] * 5,
        out_specs=vmem,
        compiler_params=pltpu.CompilerParams(vmem_limit_bytes=VMEM_LIMIT),
    )(x, pp["w1"], pp["p1"], pp["w2"], pp["p2"])


def _feature_extractor_tiled(x, pp, *, batch_tile):
    n, d_in = x.shape
    hp, dp, d_out = pp["hp"], pp["dp"], pp["d_out"]
    tn = batch_tile if batch_tile is not None else _auto_batch_tile(n, d_in, hp, dp)
    tn = max(8, _round_up(min(tn, _round_up(n, 8)), 8))
    n_tiles = pl.cdiv(n, tn)
    grid = (n_tiles,)
    inv_n = 1.0 / n

    cp = pltpu.CompilerParams(dimension_semantics=("parallel",),
                              vmem_limit_bytes=VMEM_LIMIT)
    x_spec = _streamed_x_spec(tn, d_in)
    w1_spec = pl.BlockSpec((d_in, hp), lambda i: (0, 0))      # resident
    w2_spec = pl.BlockSpec((hp, dp), lambda i: (0, 0))        # resident
    f1_spec = pl.BlockSpec((2, hp), lambda i: (0, 0))         # resident
    f2_spec = pl.BlockSpec((2, dp), lambda i: (0, 0))         # resident

    # Pass 1: per-tile partial BN1 stats (parallel -> v7x megacore friendly).
    s1_part = pl.pallas_call(
        functools.partial(_bn1_stats_kernel, tn=tn, n_real=n),
        out_shape=jax.ShapeDtypeStruct((n_tiles, 2, hp), jnp.float32),
        grid_spec=pltpu.PrefetchScalarGridSpec(
            num_scalar_prefetch=0, grid=grid,
            in_specs=[x_spec, w1_spec],
            out_specs=pl.BlockSpec((1, 2, hp), lambda i: (i, 0, 0))),
        compiler_params=cp,
    )(x, pp["w1"])
    fold1 = _fold_bn(jnp.sum(s1_part, axis=0), pp["p1"], inv_n)

    # Pass 2: recompute h, folded BN1+ReLU, second matmul, partial BN2 stats.
    s2_part = pl.pallas_call(
        functools.partial(_bn2_stats_kernel, tn=tn, n_real=n),
        out_shape=jax.ShapeDtypeStruct((n_tiles, 2, dp), jnp.float32),
        grid_spec=pltpu.PrefetchScalarGridSpec(
            num_scalar_prefetch=0, grid=grid,
            in_specs=[x_spec, w1_spec, f1_spec, w2_spec],
            out_specs=pl.BlockSpec((1, 2, dp), lambda i: (i, 0, 0))),
        compiler_params=cp,
    )(x, pp["w1"], fold1, pp["w2"])
    fold2 = _fold_bn(jnp.sum(s2_part, axis=0), pp["p2"], inv_n)

    # Pass 3: recompute, apply both folded BN+ReLU, store unpadded output.
    out = pl.pallas_call(
        functools.partial(_final_kernel, d_out=d_out),
        out_shape=jax.ShapeDtypeStruct((n, d_out), jnp.float32),
        grid_spec=pltpu.PrefetchScalarGridSpec(
            num_scalar_prefetch=0, grid=grid,
            in_specs=[x_spec, w1_spec, f1_spec, w2_spec, f2_spec],
            out_specs=pl.BlockSpec((tn, d_out), lambda i: (i, 0))),
        compiler_params=cp,
    )(x, pp["w1"], fold1, pp["w2"], fold2)
    return out


def feature_extractor(x, prepared, *, batch_tile=None, force_tiled=False):
    """x: [N, D_in] f32. prepared: output of prepare_params(). Returns [N, D_out]."""
    n = x.shape[0]
    fused_ok = n <= _fused_row_limit(prepared["d_in"], prepared["hp"],
                                     prepared["dp"], prepared["d_out"])
    if fused_ok and not force_tiled:
        return _feature_extractor_fused(x, prepared)
    return _feature_extractor_tiled(x, prepared, batch_tile=batch_tile)


# --------------------------------------------------------------------------
# Init + pure-JAX reference (mirrors the PyTorch module, biases included).
# --------------------------------------------------------------------------
def init_params(key, d_in, hidden, d_out):
    ks = jax.random.split(key, 8)
    bound1 = 1.0 / jnp.sqrt(d_in)
    bound2 = 1.0 / jnp.sqrt(hidden)
    return {
        "w1": jax.random.uniform(ks[0], (d_in, hidden), jnp.float32, -bound1, bound1),
        "b1": jax.random.uniform(ks[1], (1, hidden), jnp.float32, -bound1, bound1),
        "g1": 1.0 + 0.1 * jax.random.normal(ks[2], (1, hidden), jnp.float32),
        "be1": 0.1 * jax.random.normal(ks[3], (1, hidden), jnp.float32),
        "w2": jax.random.uniform(ks[4], (hidden, d_out), jnp.float32, -bound2, bound2),
        "b2": jax.random.uniform(ks[5], (1, d_out), jnp.float32, -bound2, bound2),
        "g2": 1.0 + 0.1 * jax.random.normal(ks[6], (1, d_out), jnp.float32),
        "be2": 0.1 * jax.random.normal(ks[7], (1, d_out), jnp.float32),
    }


def feature_extractor_ref(x, p):
    """Training-mode BN reference matching the PyTorch forward (keeps biases)."""
    h = x @ p["w1"] + p["b1"]
    m = h.mean(0, keepdims=True)
    v = ((h - m) ** 2).mean(0, keepdims=True)
    h = (h - m) / jnp.sqrt(v + BN_EPS) * p["g1"] + p["be1"]
    h = jnp.maximum(h, 0.0)
    y = h @ p["w2"] + p["b2"]
    m2 = y.mean(0, keepdims=True)
    v2 = ((y - m2) ** 2).mean(0, keepdims=True)
    y = (y - m2) / jnp.sqrt(v2 + BN_EPS) * p["g2"] + p["be2"]
    return jnp.maximum(y, 0.0)


if __name__ == "__main__":
    N, D_IN, HIDDEN, D_OUT = 8, 16, 32, 16

    key = jax.random.PRNGKey(0)
    kx, kp, kx2, kx3 = jax.random.split(key, 4)
    x = jax.random.normal(kx, (N, D_IN), jnp.float32)
    params = init_params(kp, D_IN, HIDDEN, D_OUT)
    prepared = prepare_params(params)

    # 1) Small batch -> fused, fully VMEM-resident kernel.
    out = jax.block_until_ready(feature_extractor(x, prepared))
    ref = feature_extractor_ref(x, params)
    assert out.shape == (N, D_OUT)
    assert jnp.allclose(out, ref, atol=1e-4, rtol=1e-4), (
        f"fused path max abs err = {jnp.max(jnp.abs(out - ref))}")

    # 2) Streaming path, batch divisible by the tile (4 parallel tiles of 128).
    N2 = 512
    x2 = jax.random.normal(kx2, (N2, D_IN), jnp.float32)
    ref2 = feature_extractor_ref(x2, params)
    out2 = jax.block_until_ready(
        feature_extractor(x2, prepared, batch_tile=128, force_tiled=True))
    assert out2.shape == (N2, D_OUT)
    assert jnp.allclose(out2, ref2, atol=1e-4, rtol=1e-4), (
        f"tiled path max abs err = {jnp.max(jnp.abs(out2 - ref2))}")

    # 2b) Default dispatch now routes mid-size batches through the fused path.
    out2f = jax.block_until_ready(feature_extractor(x2, prepared))
    assert jnp.allclose(out2f, ref2, atol=1e-4, rtol=1e-4), (
        f"fused mid-size max abs err = {jnp.max(jnp.abs(out2f - ref2))}")

    # 3) Streaming path with N not a multiple of the tile (masked edge tile).
    N3 = 300
    x3 = jax.random.normal(kx3, (N3, D_IN), jnp.float32)
    ref3 = feature_extractor_ref(x3, params)
    out3 = jax.block_until_ready(
        feature_extractor(x3, prepared, batch_tile=128, force_tiled=True))
    assert out3.shape == (N3, D_OUT)
    assert jnp.allclose(out3, ref3, atol=1e-4, rtol=1e-4), (
        f"masked-edge path max abs err = {jnp.max(jnp.abs(out3 - ref3))}")

    # 4) Optional bf16 MXU operands (2x MXU throughput on v6e/v7x); BN math stays
    #    f32, so only the matmul inputs lose precision -> loose tolerance here.
    prepared_bf16 = prepare_params(params, matmul_dtype=jnp.bfloat16)
    out_bf16 = jax.block_until_ready(feature_extractor(x, prepared_bf16))
    assert jnp.allclose(out_bf16, ref, atol=1e-1, rtol=1e-1), (
        f"bf16 path max abs err = {jnp.max(jnp.abs(out_bf16 - ref))}")

    print("KERNEL_OK")
</pallas_src>

<mosaic_0001>
module attributes {stable_mosaic.version = 11 : i64} {
  func.func @_fused_kernel(%arg0: memref<8x16xf32, #tpu.memory_space<vmem>>, %arg1: memref<16x128xf32, #tpu.memory_space<vmem>>, %arg2: memref<2x128xf32, #tpu.memory_space<vmem>>, %arg3: memref<128x128xf32, #tpu.memory_space<vmem>>, %arg4: memref<2x128xf32, #tpu.memory_space<vmem>>, %arg5: memref<8x16xf32, #tpu.memory_space<vmem>>) attributes {dimension_semantics = [], scalar_prefetch = 0 : i64, scratch_operands = 0 : i64, tpu.core_type = #tpu.core_type<tc>} {
    %c0 = arith.constant 0 : index
    %c0_0 = arith.constant 0 : index
    %0 = vector.load %arg0[%c0, %c0_0] : memref<8x16xf32, #tpu.memory_space<vmem>>, vector<8x16xf32>
    %c0_1 = arith.constant 0 : index
    %c0_2 = arith.constant 0 : index
    %1 = vector.load %arg1[%c0_1, %c0_2] : memref<16x128xf32, #tpu.memory_space<vmem>>, vector<16x128xf32>
    %cst = arith.constant dense<0.000000e+00> : vector<8x128xf32>
    %2 = tpu.matmul %0, %1, %cst {dimension_numbers = #tpu.dot_dimension_numbers<[1], [0], [0], [1], [0, 0, 1, 1], [], []>} : vector<8x16xf32>, vector<16x128xf32>, vector<8x128xf32> -> vector<8x128xf32>
    %cst_3 = arith.constant dense<0.000000e+00> : vector<128xf32>
    %3 = vector.multi_reduction <add>, %2, %cst_3 [0] : vector<8x128xf32> to vector<128xf32>
    %4 = vector.shape_cast %3 : vector<128xf32> to vector<1x128xf32>
    %cst_4 = arith.constant 8.000000e+00 : f32
    %5 = vector.broadcast %cst_4 : f32 to vector<1x128xf32>
    %6 = arith.divf %4, %5 : vector<1x128xf32>
    %7 = arith.mulf %2, %2 : vector<8x128xf32>
    %cst_5 = arith.constant dense<0.000000e+00> : vector<128xf32>
    %8 = vector.multi_reduction <add>, %7, %cst_5 [0] : vector<8x128xf32> to vector<128xf32>
    %9 = vector.shape_cast %8 : vector<128xf32> to vector<1x128xf32>
    %cst_6 = arith.constant 8.000000e+00 : f32
    %10 = vector.broadcast %cst_6 : f32 to vector<1x128xf32>
    %11 = arith.divf %9, %10 : vector<1x128xf32>
    %12 = arith.mulf %6, %6 : vector<1x128xf32>
    %13 = arith.subf %11, %12 : vector<1x128xf32>
    %cst_7 = arith.constant 0.000000e+00 : f32
    %14 = vector.broadcast %cst_7 : f32 to vector<1x128xf32>
    %15 = arith.maximumf %13, %14 : vector<1x128xf32>
    %c0_8 = arith.constant 0 : index
    %c0_9 = arith.constant 0 : index
    %16 = vector.load %arg2[%c0_8, %c0_9] : memref<2x128xf32, #tpu.memory_space<vmem>>, vector<1x128xf32>
    %cst_10 = arith.constant 9.99999974E-6 : f32
    %17 = vector.broadcast %cst_10 : f32 to vector<1x128xf32>
    %18 = arith.addf %15, %17 : vector<1x128xf32>
    %19 = math.rsqrt %18 : vector<1x128xf32>
    %20 = arith.mulf %16, %19 : vector<1x128xf32>
    %c1 = arith.constant 1 : index
    %c0_11 = arith.constant 0 : index
    %21 = vector.load %arg2[%c1, %c0_11] : memref<2x128xf32, #tpu.memory_space<vmem>>, vector<1x128xf32>
    %22 = arith.mulf %6, %20 : vector<1x128xf32>
    %23 = arith.subf %21, %22 : vector<1x128xf32>
    %24 = vector.broadcast %20 : vector<1x128xf32> to vector<8x128xf32>
    %25 = arith.mulf %2, %24 : vector<8x128xf32>
    %26 = vector.broadcast %23 : vector<1x128xf32> to vector<8x128xf32>
    %27 = arith.addf %25, %26 : vector<8x128xf32>
    %cst_12 = arith.constant 0.000000e+00 : f32
    %28 = vector.broadcast %cst_12 : f32 to vector<8x128xf32>
    %29 = arith.maximumf %27, %28 : vector<8x128xf32>
    %c0_13 = arith.constant 0 : index
    %c0_14 = arith.constant 0 : index
    %30 = vector.load %arg3[%c0_13, %c0_14] : memref<128x128xf32, #tpu.memory_space<vmem>>, vector<128x128xf32>
    %cst_15 = arith.constant dense<0.000000e+00> : vector<8x128xf32>
    %31 = tpu.matmul %29, %30, %cst_15 {dimension_numbers = #tpu.dot_dimension_numbers<[1], [0], [0], [1], [0, 0, 1, 1], [], []>} : vector<8x128xf32>, vector<128x128xf32>, vector<8x128xf32> -> vector<8x128xf32>
    %cst_16 = arith.constant dense<0.000000e+00> : vector<128xf32>
    %32 = vector.multi_reduction <add>, %31, %cst_16 [0] : vector<8x128xf32> to vector<128xf32>
    %33 = vector.shape_cast %32 : vector<128xf32> to vector<1x128xf32>
    %cst_17 = arith.constant 8.000000e+00 : f32
    %34 = vector.broadcast %cst_17 : f32 to vector<1x128xf32>
    %35 = arith.divf %33, %34 : vector<1x128xf32>
    %36 = arith.mulf %31, %31 : vector<8x128xf32>
    %cst_18 = arith.constant dense<0.000000e+00> : vector<128xf32>
    %37 = vector.multi_reduction <add>, %36, %cst_18 [0] : vector<8x128xf32> to vector<128xf32>
    %38 = vector.shape_cast %37 : vector<128xf32> to vector<1x128xf32>
    %cst_19 = arith.constant 8.000000e+00 : f32
    %39 = vector.broadcast %cst_19 : f32 to vector<1x128xf32>
    %40 = arith.divf %38, %39 : vector<1x128xf32>
    %41 = arith.mulf %35, %35 : vector<1x128xf32>
    %42 = arith.subf %40, %41 : vector<1x128xf32>
    %cst_20 = arith.constant 0.000000e+00 : f32
    %43 = vector.broadcast %cst_20 : f32 to vector<1x128xf32>
    %44 = arith.maximumf %42, %43 : vector<1x128xf32>
    %c0_21 = arith.constant 0 : index
    %c0_22 = arith.constant 0 : index
    %45 = vector.load %arg4[%c0_21, %c0_22] : memref<2x128xf32, #tpu.memory_space<vmem>>, vector<1x128xf32>
    %cst_23 = arith.constant 9.99999974E-6 : f32
    %46 = vector.broadcast %cst_23 : f32 to vector<1x128xf32>
    %47 = arith.addf %44, %46 : vector<1x128xf32>
    %48 = math.rsqrt %47 : vector<1x128xf32>
    %49 = arith.mulf %45, %48 : vector<1x128xf32>
    %c1_24 = arith.constant 1 : index
    %c0_25 = arith.constant 0 : index
    %50 = vector.load %arg4[%c1_24, %c0_25] : memref<2x128xf32, #tpu.memory_space<vmem>>, vector<1x128xf32>
    %51 = arith.mulf %35, %49 : vector<1x128xf32>
    %52 = arith.subf %50, %51 : vector<1x128xf32>
    %53 = vector.broadcast %49 : vector<1x128xf32> to vector<8x128xf32>
    %54 = arith.mulf %31, %53 : vector<8x128xf32>
    %55 = vector.broadcast %52 : vector<1x128xf32> to vector<8x128xf32>
    %56 = arith.addf %54, %55 : vector<8x128xf32>
    %cst_26 = arith.constant 0.000000e+00 : f32
    %57 = vector.broadcast %cst_26 : f32 to vector<8x128xf32>
    %58 = arith.maximumf %56, %57 : vector<8x128xf32>
    %59 = vector.extract_strided_slice %58 {offsets = [0, 0], sizes = [8, 16], strides = [1, 1]} : vector<8x128xf32> to vector<8x16xf32>
    %c0_27 = arith.constant 0 : index
    %c0_28 = arith.constant 0 : index
    %60 = vector.load %arg5[%c0_27, %c0_28] : memref<8x16xf32, #tpu.memory_space<vmem>>, vector<8x16xf32>
    tpu.vector_store %arg5[%c0_27, %c0_28], %59 {strides = array<i32>} : memref<8x16xf32, #tpu.memory_space<vmem>>, vector<8x16xf32>,
    return
  }
}

</mosaic_0001>

<llo_original>
// kernel: tpu_custom_call.1
$region0: #{tpu_custom_call.1}
  #allocation0 [shape = 'u32[]', space=smem, size = 0x4, offset = 0x4, fixed_abs, tag = 'smem constant byte address 0x4 - core index']
  #allocation1 [shape = 'u32[144,128]{1,0:T(1,128)}', space=vmem, size = 0x12000, scoped, tag = 'internal scratch']
  %s0 = inlined_call_operand.hbm [shape: f32[8,16], index: 0, kind: input, shape index: {}]
  %s1 = inlined_call_operand.hbm [shape: f32[16,128], index: 1, kind: input, shape index: {}]
  %s2 = inlined_call_operand.vmem [shape: f32[2,128], index: 2, kind: input, shape index: {}]
  %s3 = inlined_call_operand.hbm [shape: f32[128,128], index: 3, kind: input, shape index: {}]
  %s4 = inlined_call_operand.vmem [shape: f32[2,128], index: 4, kind: input, shape index: {}]
  %s5 = inlined_call_operand.hbm [shape: f32[8,16], index: 5, kind: output, shape index: {}]
  %s6 = sld [smem:[#allocation0]]
  $region42: #{tpu_custom_call.1} parent=0
    _
  %s8 = ssub.s32 1, %s6
  %s9 = scalar_select 0, %s8, %s6
  $region1: #{tpu_custom_call.1} parent=0
    #allocation2 [shape = 'u8[4096]{0}', space=vmem, size = 0x1000, scoped, tag = 'input window, operand 0, single buffered']
    #allocation3 [shape = 's32[1]{0}', space=sflag, size = 0x4, scoped, tag = 'scoped memory for tpu_custom_call.1']
    #allocation4 [shape = 's32[1]{0}', space=sflag, size = 0x4, scoped, tag = 'scoped memory for tpu_custom_call.1']
    #allocation5 [shape = 'u8[8192]{0}', space=vmem, size = 0x2000, scoped, tag = 'input window, operand 1, single buffered']
    #allocation6 [shape = 's32[1]{0}', space=sflag, size = 0x4, scoped, tag = 'scoped memory for tpu_custom_call.1']
    #allocation7 [shape = 'u8[65536]{0}', space=vmem, size = 0x10000, scoped, tag = 'input window, operand 3, single buffered']
    #allocation8 [shape = 'u8[4096]{0}', space=vmem, size = 0x1000, scoped, tag = 'output window, operand 0, single buffered']
    %10 = vsyncpa [#allocation3], 0
    %11 = vsyncpa [#allocation6], 0
    %12 = vsyncpa [#allocation4], 0
    // Predicated region
    $region2: #{tpu_custom_call.1} parent=1 // pred_check
      _
    $region3: #{tpu_custom_call.1} parent=1 // pred_check_branch
      %14 = sbr.rel (0) target = $region5
    $region4: #{tpu_custom_call.1} parent=1 // pred_region
      %s16 = ssub.s32 128, 128
      %17 = vsyncadd [#allocation3], %s16
      %s19 = sshll.u32 [#allocation2], 4
      %s20 = int_to_ptr.vmem [resolvable:$true] %s19
      %22 = dma.hbm_to_vmem [thread:$0]  %s0, 128, %s20, [#allocation3]
    $region5: #{tpu_custom_call.1} parent=1 // pred_fallthru
      _
    // Predicated region
    $region6: #{tpu_custom_call.1} parent=1 // pred_check
      _
    $region7: #{tpu_custom_call.1} parent=1 // pred_check_branch
      %24 = sbr.rel (0) target = $region9
    $region8: #{tpu_custom_call.1} parent=1 // pred_region
      %s26 = ssub.s32 256, 256
      %27 = vsyncadd [#allocation6], %s26
      %s28 = sshll.u32 [#allocation5], 4
      %s29 = int_to_ptr.vmem [resolvable:$true] %s28
      %34 = dma.hbm_to_vmem [thread:$0]  %s1, 256, %s29, [#allocation6], 128, 128, 8
    $region9: #{tpu_custom_call.1} parent=1 // pred_fallthru
      _
    // Predicated region
    $region10: #{tpu_custom_call.1} parent=1 // pred_check
      _
    $region11: #{tpu_custom_call.1} parent=1 // pred_check_branch
      %36 = sbr.rel (0) target = $region13
    $region12: #{tpu_custom_call.1} parent=1 // pred_region
      _
    $region13: #{tpu_custom_call.1} parent=1 // pred_fallthru
      _
    // Predicated region
    $region14: #{tpu_custom_call.1} parent=1 // pred_check
      _
    $region15: #{tpu_custom_call.1} parent=1 // pred_check_branch
      %38 = sbr.rel (0) target = $region17
    $region16: #{tpu_custom_call.1} parent=1 // pred_region
      %s40 = ssub.s32 2048, 2048
      %41 = vsyncadd [#allocation6], %s40
      %s42 = sshll.u32 [#allocation7], 4
      %s43 = int_to_ptr.vmem [resolvable:$true] %s42
      %48 = dma.hbm_to_vmem [thread:$0]  %s3, 2048, %s43, [#allocation6], 128, 128, 8
    $region17: #{tpu_custom_call.1} parent=1 // pred_fallthru
      _
    // Predicated region
    $region18: #{tpu_custom_call.1} parent=1 // pred_check
      _
    $region19: #{tpu_custom_call.1} parent=1 // pred_check_branch
      %50 = sbr.rel (0) target = $region21
    $region20: #{tpu_custom_call.1} parent=1 // pred_region
      _
    $region21: #{tpu_custom_call.1} parent=1 // pred_fallthru
      _
    // Predicated region
    $region22: #{tpu_custom_call.1} parent=1 // pred_check
      _
    $region23: #{tpu_custom_call.1} parent=1 // pred_check_branch
      %52 = sbr.rel (0) target = $region25
    $region24: #{tpu_custom_call.1} parent=1 // pred_region
      %53 = dma.done [#allocation3], 128
    $region25: #{tpu_custom_call.1} parent=1 // pred_fallthru
      _
    // Predicated region
    $region26: #{tpu_custom_call.1} parent=1 // pred_check
      _
    $region27: #{tpu_custom_call.1} parent=1 // pred_check_branch
      %55 = sbr.rel (0) target = $region29
    $region28: #{tpu_custom_call.1} parent=1 // pred_region
      %56 = dma.done [#allocation6], 256
    $region29: #{tpu_custom_call.1} parent=1 // pred_fallthru
      _
    // Predicated region
    $region30: #{tpu_custom_call.1} parent=1 // pred_check
      _
    $region31: #{tpu_custom_call.1} parent=1 // pred_check_branch
      %58 = sbr.rel (0) target = $region33
    $region32: #{tpu_custom_call.1} parent=1 // pred_region
      %59 = dma.done [#allocation6], 2048
    $region33: #{tpu_custom_call.1} parent=1 // pred_fallthru
      _
    %v60 = vld [vmem:[#allocation2] sm:$0xff]
    %v61 = vld [vmem:[#allocation5] sm:$0xff]
    %v62 = vld [vmem:[#allocation5 + $0x8] sm:$0xff]
    %vm63 = vcmask 130048
    %v65 = vsel %vm63, %v60, 0
    %67 = vmatprep.subr.mxu0 0.0
    %68 = vmatpush1.msra.mxu0 %v61
    %69 = vmatprep.subr.mxu0 0.0
    %70 = vmatpush1.msra.mxu0 %v62
    %71 = vmatprep.subr.mxu0 0.0
    %72 = vmatpush1.msra.mxu0 0.0
    %73 = vmatprep.subr.mxu0 0.0
    %74 = vmatpush1.msra.mxu0 0.0
    %75 = vmatprep.subr.mxu0 0.0
    %76 = vmatpush1.msra.mxu0 0.0
    %77 = vmatprep.subr.mxu0 0.0
    %78 = vmatpush1.msra.mxu0 0.0
    %79 = vmatprep.subr.mxu0 0.0
    %80 = vmatpush1.msra.mxu0 0.0
    %81 = vmatprep.subr.mxu0 0.0
    %82 = vmatpush1.msra.mxu0 0.0
    %83 = vmatprep.subr.mxu0 0.0
    %84 = vmatpush1.msra.mxu0 0.0
    %85 = vmatprep.subr.mxu0 0.0
    %86 = vmatpush1.msra.mxu0 0.0
    %87 = vmatprep.subr.mxu0 0.0
    %88 = vmatpush1.msra.mxu0 0.0
    %89 = vmatprep.subr.mxu0 0.0
    %90 = vmatpush1.msra.mxu0 0.0
    %91 = vmatprep.subr.mxu0 0.0
    %92 = vmatpush1.msra.mxu0 0.0
    %93 = vmatprep.subr.mxu0 0.0
    %94 = vmatpush1.msra.mxu0 0.0
    %95 = vmatprep.subr.mxu0 0.0
    %96 = vmatpush1.msra.mxu0 0.0
    %97 = vmatprep.subr.mxu0 0.0
    %98 = vmatpush1.msra.mxu0 0.0
    %99 = vmatprep.subr.mxu0 0.0
    %100 = vmatpush1.msra.mxu0 0.0
    %101 = vmatprep.subr.mxu0 0.0
    %102 = vmatpush1.msra.mxu0 0.0
    %103 = vmatprep.subr.mxu0 0.0
    %104 = vmatpush1.msra.mxu0 0.0
    %105 = vmatprep.subr.mxu0 0.0
    %106 = vmatpush1.msra.mxu0 0.0
    %107 = vmatprep.subr.mxu0 0.0
    %108 = vmatpush1.msra.mxu0 0.0
    %109 = vmatprep.subr.mxu0 0.0
    %110 = vmatpush1.msra.mxu0 0.0
    %111 = vmatprep.subr.mxu0 0.0
    %112 = vmatpush1.msra.mxu0 0.0
    %113 = vmatprep.subr.mxu0 0.0
    %114 = vmatpush1.msra.mxu0 0.0
    %115 = vmatprep.subr.mxu0 0.0
    %116 = vmatpush1.msra.mxu0 0.0
    %117 = vmatprep.subr.mxu0 0.0
    %118 = vmatpush1.msra.mxu0 0.0
    %119 = vmatprep.subr.mxu0 0.0
    %120 = vmatpush1.msra.mxu0 0.0
    %121 = vmatprep.subr.mxu0 0.0
    %122 = vmatpush1.msra.mxu0 0.0
    %123 = vmatprep.subr.mxu0 0.0
    %124 = vmatpush1.msra.mxu0 0.0
    %125 = vmatprep.subr.mxu0 0.0
    %126 = vmatpush1.msra.mxu0 0.0
    %127 = vmatprep.subr.mxu0 0.0
    %128 = vmatpush1.msra.mxu0 0.0
    %129 = vmatprep.subr.mxu0 0.0
    %130 = vmatpush1.msra.mxu0 0.0
    %131 = vmatprep.mubr.f32.mxu0 0.0
    %132 = vmatmul.mubr.f32.gmra.mrb[0].mxu0 %v65
    %v133 = vpop.f32.mrb[0].mxu0
    %v134 = vadd.f32 0.0, %v133
    %v135 = vpop.f32.mrb[0].mxu0
    %136 = vdwg.mxu0
    %v137 = vrot.slane %v134, 4
    %v138 = vadd.f32 %v134, %v137
    %v139 = vrot.slane %v138, 2
    %v140 = vadd.f32 %v138, %v139
    %v141 = vrot.slane %v140, 1
    %v142 = vadd.f32 %v140, %v141
    %v143 = vrcp.pop 8.0
    %v144 = vmul.f32 %v142, %v143
    %v145 = vmul.f32 %v134, %v134
    %v146 = vrot.slane %v145, 4
    %v147 = vadd.f32 %v145, %v146
    %v148 = vrot.slane %v147, 2
    %v149 = vadd.f32 %v147, %v148
    %v150 = vrot.slane %v149, 1
    %v151 = vadd.f32 %v149, %v150
    %v152 = vmul.f32 %v151, %v143
    %v153 = vmul.f32 %v144, %v144
    %v154 = vsub.f32 %v152, %v153
    %v155 = vmax.f32 %v154, 0.0
    %v156 = vld [vmem:[%s2] sm:$0x1]
    %v157 = vadd.f32 %v155, 1e-05
    %v158 = vrsqrt.pop %v157
    %v159 = vmul.f32 %v156, %v158
    %v160 = vld [vmem:[%s2 + $0x1] sm:$0x1]
    %v161 = vmul.f32 %v144, %v159
    %v162 = vsub.f32 %v160, %v161
    %v163 = vlaneseq
    %v164 = vshrl.u32 %v163, 7
    %v165 = vsub.s32 0, %v164
    %v166 = vrot.slane %v159, %v165
    %v167 = vmul.f32 %v134, %v166
    %v168 = vlaneseq
    %v169 = vshrl.u32 %v168, 7
    %v170 = vsub.s32 0, %v169
    %v171 = vrot.slane %v162, %v170
    %v172 = vadd.f32 %v167, %v171
    %v173 = vmax.f32 %v172, 0.0
    %v174 = vld [vmem:[#allocation7] sm:$0xff]
    %v175 = vld [vmem:[#allocation7 + $0x8] sm:$0xff]
    %v176 = vld [vmem:[#allocation7 + $0x10] sm:$0xff]
    %v177 = vld [vmem:[#allocation7 + $0x18] sm:$0xff]
    %v178 = vld [vmem:[#allocation7 + $0x20] sm:$0xff]
    %v179 = vld [vmem:[#allocation7 + $0x28] sm:$0xff]
    %v180 = vld [vmem:[#allocation7 + $0x30] sm:$0xff]
    %v181 = vld [vmem:[#allocation7 + $0x38] sm:$0xff]
    %v182 = vld [vmem:[#allocation7 + $0x40] sm:$0xff]
    %v183 = vld [vmem:[#allocation7 + $0x48] sm:$0xff]
    %v184 = vld [vmem:[#allocation7 + $0x50] sm:$0xff]
    %v185 = vld [vmem:[#allocation7 + $0x58] sm:$0xff]
    %v186 = vld [vmem:[#allocation7 + $0x60] sm:$0xff]
    %v187 = vld [vmem:[#allocation7 + $0x68] sm:$0xff]
    %v188 = vld [vmem:[#allocation7 + $0x70] sm:$0xff]
    %v189 = vld [vmem:[#allocation7 + $0x78] sm:$0xff]
    %190 = vmatprep.subr.mxu0 0.0
    %191 = vmatpush1.msra.mxu0 %v174
    %192 = vmatprep.subr.mxu0 0.0
    %193 = vmatpush1.msra.mxu0 %v175
    %194 = vmatprep.subr.mxu0 0.0
    %195 = vmatpush1.msra.mxu0 %v176
    %196 = vmatprep.subr.mxu0 0.0
    %197 = vmatpush1.msra.mxu0 %v177
    %198 = vmatprep.subr.mxu0 0.0
    %199 = vmatpush1.msra.mxu0 %v178
    %200 = vmatprep.subr.mxu0 0.0
    %201 = vmatpush1.msra.mxu0 %v179
    %202 = vmatprep.subr.mxu0 0.0
    %203 = vmatpush1.msra.mxu0 %v180
    %204 = vmatprep.subr.mxu0 0.0
    %205 = vmatpush1.msra.mxu0 %v181
    %206 = vmatprep.subr.mxu0 0.0
    %207 = vmatpush1.msra.mxu0 %v182
    %208 = vmatprep.subr.mxu0 0.0
    %209 = vmatpush1.msra.mxu0 %v183
    %210 = vmatprep.subr.mxu0 0.0
    %211 = vmatpush1.msra.mxu0 %v184
    %212 = vmatprep.subr.mxu0 0.0
    %213 = vmatpush1.msra.mxu0 %v185
    %214 = vmatprep.subr.mxu0 0.0
    %215 = vmatpush1.msra.mxu0 %v186
    %216 = vmatprep.subr.mxu0 0.0
    %217 = vmatpush1.msra.mxu0 %v187
    %218 = vmatprep.subr.mxu0 0.0
    %219 = vmatpush1.msra.mxu0 %v188
    %220 = vmatprep.subr.mxu0 0.0
    %221 = vmatpush1.msra.mxu0 %v189
    %222 = vmatprep.subr.mxu0 0.0
    %223 = vmatpush1.msra.mxu0 0.0
    %224 = vmatprep.subr.mxu0 0.0
    %225 = vmatpush1.msra.mxu0 0.0
    %226 = vmatprep.subr.mxu0 0.0
    %227 = vmatpush1.msra.mxu0 0.0
    %228 = vmatprep.subr.mxu0 0.0
    %229 = vmatpush1.msra.mxu0 0.0
    %230 = vmatprep.subr.mxu0 0.0
    %231 = vmatpush1.msra.mxu0 0.0
    %232 = vmatprep.subr.mxu0 0.0
    %233 = vmatpush1.msra.mxu0 0.0
    %234 = vmatprep.subr.mxu0 0.0
    %235 = vmatpush1.msra.mxu0 0.0
    %236 = vmatprep.subr.mxu0 0.0
    %237 = vmatpush1.msra.mxu0 0.0
    %238 = vmatprep.subr.mxu0 0.0
    %239 = vmatpush1.msra.mxu0 0.0
    %240 = vmatprep.subr.mxu0 0.0
    %241 = vmatpush1.msra.mxu0 0.0
    %242 = vmatprep.subr.mxu0 0.0
    %243 = vmatpush1.msra.mxu0 0.0
    %244 = vmatprep.subr.mxu0 0.0
    %245 = vmatpush1.msra.mxu0 0.0
    %246 = vmatprep.subr.mxu0 0.0
    %247 = vmatpush1.msra.mxu0 0.0
    %248 = vmatprep.subr.mxu0 0.0
    %249 = vmatpush1.msra.mxu0 0.0
    %250 = vmatprep.subr.mxu0 0.0
    %251 = vmatpush1.msra.mxu0 0.0
    %252 = vmatprep.subr.mxu0 0.0
    %253 = vmatpush1.msra.mxu0 0.0
    %254 = vmatprep.mubr.f32.mxu0 0.0
    %255 = vmatmul.mubr.f32.gmra.mrb[0].mxu0 %v173
    %v256 = vpop.f32.mrb[0].mxu0
    %v257 = vadd.f32 0.0, %v256
    %v258 = vpop.f32.mrb[0].mxu0
    %259 = vdwg.mxu0
    %v260 = vrot.slane %v257, 4
    %v261 = vadd.f32 %v257, %v260
    %v262 = vrot.slane %v261, 2
    %v263 = vadd.f32 %v261, %v262
    %v264 = vrot.slane %v263, 1
    %v265 = vadd.f32 %v263, %v264
    %v266 = vmul.f32 %v265, %v143
    %v267 = vmul.f32 %v257, %v257
    %v268 = vrot.slane %v267, 4
    %v269 = vadd.f32 %v267, %v268
    %v270 = vrot.slane %v269, 2
    %v271 = vadd.f32 %v269, %v270
    %v272 = vrot.slane %v271, 1
    %v273 = vadd.f32 %v271, %v272
    %v274 = vmul.f32 %v273, %v143
    %v275 = vmul.f32 %v266, %v266
    %v276 = vsub.f32 %v274, %v275
    %v277 = vmax.f32 %v276, 0.0
    %v278 = vld [vmem:[%s4] sm:$0x1]
    %v279 = vadd.f32 %v277, 1e-05
    %v280 = vrsqrt.pop %v279
    %v281 = vmul.f32 %v278, %v280
    %v282 = vld [vmem:[%s4 + $0x1] sm:$0x1]
    %v283 = vmul.f32 %v266, %v281
    %v284 = vsub.f32 %v282, %v283
    %v285 = vlaneseq
    %v286 = vshrl.u32 %v285, 7
    %v287 = vsub.s32 0, %v286
    %v288 = vrot.slane %v281, %v287
    %v289 = vmul.f32 %v257, %v288
    %v290 = vlaneseq
    %v291 = vshrl.u32 %v290, 7
    %v292 = vsub.s32 0, %v291
    %v293 = vrot.slane %v284, %v292
    %v294 = vadd.f32 %v289, %v293
    %v295 = vmax.f32 %v294, 0.0
    %296 = vst.msk [vmem:[#allocation8] sm:$0xff] %vm63, %v295
    // Predicated region
    $region34: #{tpu_custom_call.1} parent=1 // pred_check
      _
    $region35: #{tpu_custom_call.1} parent=1 // pred_check_branch
      %298 = sbr.rel (0) target = $region37
    $region36: #{tpu_custom_call.1} parent=1 // pred_region
      %s300 = ssub.s32 128, 128
      %301 = vsyncadd [#allocation4], %s300
      %s303 = sshll.u32 [#allocation8], 4
      %s304 = int_to_ptr.vmem [resolvable:$true] %s303
      %306 = dma.vmem_to_hbm [thread:$0]  %s304, 128, %s5, [#allocation4]
    $region37: #{tpu_custom_call.1} parent=1 // pred_fallthru
      _
    // Predicated region
    $region38: #{tpu_custom_call.1} parent=1 // pred_check
      _
    $region39: #{tpu_custom_call.1} parent=1 // pred_check_branch
      %308 = sbr.rel (0) target = $region41
    $region40: #{tpu_custom_call.1} parent=1 // pred_region
      %309 = dma.done [#allocation4], 128
    $region41: #{tpu_custom_call.1} parent=1 // pred_fallthru
      _
    %310 = vsyncpa [#allocation3], 1
    %311 = vsyncpa [#allocation6], 1
    %312 = vsyncpa [#allocation4], 1

</llo_original>
